<compile_context>
chip_gen: v6e
topology: v6e:2x2x1
jax: 0.10.0
libtpu: 0.0.40
codegen_flags: <defaults>
</compile_context>

<pallas_src>
import functools

import jax
import jax.numpy as jnp
from jax.experimental import pallas as pl
from jax.experimental.pallas import tpu as pltpu


def _stce_kernel(x_ref, t_ref, loss_ref, mean_ref, *,
                 inv_temp_t, inv_temp_s, inv_n):
    x = x_ref[...].astype(jnp.float32) * inv_temp_s   # (N, C) student logits / temp_s
    t = t_ref[...].astype(jnp.float32) * inv_temp_t   # (N, C) teacher logits / temp_t

    # p = softmax(target / temp_t), numerically stabilized.
    t = t - jnp.max(t, axis=-1, keepdims=True)
    et = jnp.exp(t)
    p = et * pl.reciprocal(jnp.sum(et, axis=-1, keepdims=True))

    # log q = log_softmax(x / temp_s), numerically stabilized.
    x = x - jnp.max(x, axis=-1, keepdims=True)
    logq = x - jnp.log(jnp.sum(jnp.exp(x), axis=-1, keepdims=True))

    # Per-row soft cross-entropy, then the mean over rows (sublane reduce).
    rows = -jnp.sum(p * logq, axis=-1, keepdims=True)          # (N, 1)
    loss_ref[...] = rows
    mean_ref[...] = jnp.sum(rows, axis=0, keepdims=True) * inv_n  # (1, 1)


def soft_target_cross_entropy(x, target, *, temp_t=1.0, temp_s=1.0, mean=True):
    """Pallas implementation of SoftTargetCrossEntropy_v2.forward.

    x, target: (N, C) logits. Returns scalar mean loss (mean=True) or (N,) losses.
    """
    assert x.shape == target.shape and x.ndim == 2
    n, _ = x.shape

    kernel = functools.partial(
        _stce_kernel,
        inv_temp_t=1.0 / float(temp_t),
        inv_temp_s=1.0 / float(temp_s),
        inv_n=1.0 / float(n),
    )

    loss_rows, loss_mean = pl.pallas_call(
        kernel,
        out_shape=(
            jax.ShapeDtypeStruct((n, 1), jnp.float32),   # per-row losses
            jax.ShapeDtypeStruct((1, 1), jnp.float32),   # mean loss
        ),
        in_specs=[
            pl.BlockSpec(memory_space=pltpu.MemorySpace.VMEM),
            pl.BlockSpec(memory_space=pltpu.MemorySpace.VMEM),
        ],
        out_specs=(
            pl.BlockSpec(memory_space=pltpu.MemorySpace.VMEM),
            pl.BlockSpec(memory_space=pltpu.MemorySpace.VMEM),
        ),
    )(x, target)

    if mean:
        return loss_mean[0, 0]
    return loss_rows[:, 0]


def stce_reference(x, target, temp_t=1.0, temp_s=1.0, mean=True):
    """Plain-JAX reference matching the PyTorch forward."""
    p = jax.nn.softmax(target / temp_t, axis=-1)
    logq = jax.nn.log_softmax(x / temp_s, axis=-1)
    loss = jnp.sum(-p * logq, axis=-1)
    return loss.mean() if mean else loss


if __name__ == "__main__":
    # Small shapes consistent with a classification loss: 8 samples, 128 classes
    # (128 keeps the class axis lane-dense on TPU).
    N, C = 8, 128
    temp_t, temp_s = 2.0, 1.5   # exercise the temperature scaling

    key = jax.random.PRNGKey(0)
    kx, kt = jax.random.split(key)
    x = jax.random.normal(kx, (N, C), dtype=jnp.float32)
    target = jax.random.normal(kt, (N, C), dtype=jnp.float32) * 3.0

    loss_mean = soft_target_cross_entropy(x, target, temp_t=temp_t, temp_s=temp_s, mean=True)
    loss_rows = soft_target_cross_entropy(x, target, temp_t=temp_t, temp_s=temp_s, mean=False)
    loss_mean, loss_rows = jax.block_until_ready((loss_mean, loss_rows))

    ref_mean = stce_reference(x, target, temp_t, temp_s, mean=True)
    ref_rows = stce_reference(x, target, temp_t, temp_s, mean=False)

    assert loss_rows.shape == (N,)
    assert jnp.allclose(loss_mean, ref_mean, atol=1e-4, rtol=1e-4), (loss_mean, ref_mean)
    assert jnp.allclose(loss_rows, ref_rows, atol=1e-4, rtol=1e-4), "row loss mismatch"

    print("KERNEL_OK")
</pallas_src>

<mosaic_0001>
module attributes {stable_mosaic.version = 11 : i64} {
  func.func @_stce_kernel(%arg0: memref<8x128xf32, #tpu.memory_space<vmem>>, %arg1: memref<8x128xf32, #tpu.memory_space<vmem>>, %arg2: memref<8x1xf32, #tpu.memory_space<vmem>>, %arg3: memref<1x1xf32, #tpu.memory_space<vmem>>) attributes {dimension_semantics = [], scalar_prefetch = 0 : i64, scratch_operands = 0 : i64, tpu.core_type = #tpu.core_type<tc>} {
    %c0 = arith.constant 0 : index
    %c0_0 = arith.constant 0 : index
    %0 = vector.load %arg0[%c0, %c0_0] : memref<8x128xf32, #tpu.memory_space<vmem>>, vector<8x128xf32>
    %cst = arith.constant 0.666666686 : f32
    %1 = vector.broadcast %cst : f32 to vector<8x128xf32>
    %2 = arith.mulf %0, %1 : vector<8x128xf32>
    %c0_1 = arith.constant 0 : index
    %c0_2 = arith.constant 0 : index
    %3 = vector.load %arg1[%c0_1, %c0_2] : memref<8x128xf32, #tpu.memory_space<vmem>>, vector<8x128xf32>
    %cst_3 = arith.constant 5.000000e-01 : f32
    %4 = vector.broadcast %cst_3 : f32 to vector<8x128xf32>
    %5 = arith.mulf %3, %4 : vector<8x128xf32>
    %cst_4 = arith.constant dense<0xFF800000> : vector<8xf32>
    %6 = vector.multi_reduction <maximumf>, %5, %cst_4 [1] : vector<8x128xf32> to vector<8xf32>
    %7 = vector.shape_cast %6 : vector<8xf32> to vector<8x1xf32>
    %8 = vector.broadcast %7 : vector<8x1xf32> to vector<8x128xf32>
    %9 = arith.subf %5, %8 : vector<8x128xf32>
    %10 = math.exp %9 : vector<8x128xf32>
    %cst_5 = arith.constant dense<0.000000e+00> : vector<8xf32>
    %11 = vector.multi_reduction <add>, %10, %cst_5 [1] : vector<8x128xf32> to vector<8xf32>
    %12 = vector.shape_cast %11 : vector<8xf32> to vector<8x1xf32>
    %13 = tpu.reciprocal %12 : vector<8x1xf32> -> vector<8x1xf32>
    %14 = vector.broadcast %13 : vector<8x1xf32> to vector<8x128xf32>
    %15 = arith.mulf %10, %14 : vector<8x128xf32>
    %cst_6 = arith.constant dense<0xFF800000> : vector<8xf32>
    %16 = vector.multi_reduction <maximumf>, %2, %cst_6 [1] : vector<8x128xf32> to vector<8xf32>
    %17 = vector.shape_cast %16 : vector<8xf32> to vector<8x1xf32>
    %18 = vector.broadcast %17 : vector<8x1xf32> to vector<8x128xf32>
    %19 = arith.subf %2, %18 : vector<8x128xf32>
    %20 = math.exp %19 : vector<8x128xf32>
    %cst_7 = arith.constant dense<0.000000e+00> : vector<8xf32>
    %21 = vector.multi_reduction <add>, %20, %cst_7 [1] : vector<8x128xf32> to vector<8xf32>
    %22 = vector.shape_cast %21 : vector<8xf32> to vector<8x1xf32>
    %23 = math.log %22 : vector<8x1xf32>
    %24 = vector.broadcast %23 : vector<8x1xf32> to vector<8x128xf32>
    %25 = arith.subf %19, %24 : vector<8x128xf32>
    %26 = arith.mulf %15, %25 : vector<8x128xf32>
    %cst_8 = arith.constant dense<0.000000e+00> : vector<8xf32>
    %27 = vector.multi_reduction <add>, %26, %cst_8 [1] : vector<8x128xf32> to vector<8xf32>
    %28 = vector.shape_cast %27 : vector<8xf32> to vector<8x1xf32>
    %cst_9 = arith.constant 0.000000e+00 : f32
    %29 = vector.broadcast %cst_9 : f32 to vector<8x1xf32>
    %30 = arith.subf %29, %28 : vector<8x1xf32>
    %c0_10 = arith.constant 0 : index
    %c0_11 = arith.constant 0 : index
    %31 = vector.load %arg2[%c0_10, %c0_11] : memref<8x1xf32, #tpu.memory_space<vmem>>, vector<8x1xf32>
    tpu.vector_store %arg2[%c0_10, %c0_11], %30 {strides = array<i32>} : memref<8x1xf32, #tpu.memory_space<vmem>>, vector<8x1xf32>,
    %cst_12 = arith.constant dense<0.000000e+00> : vector<1xf32>
    %32 = vector.multi_reduction <add>, %30, %cst_12 [0] : vector<8x1xf32> to vector<1xf32>
    %33 = vector.shape_cast %32 : vector<1xf32> to vector<1x1xf32>
    %cst_13 = arith.constant 1.250000e-01 : f32
    %34 = vector.broadcast %cst_13 : f32 to vector<1x1xf32>
    %35 = arith.mulf %33, %34 : vector<1x1xf32>
    %c0_14 = arith.constant 0 : index
    %c0_15 = arith.constant 0 : index
    %36 = vector.load %arg3[%c0_14, %c0_15] : memref<1x1xf32, #tpu.memory_space<vmem>>, vector<1x1xf32>
    tpu.vector_store %arg3[%c0_14, %c0_15], %35 {strides = array<i32>} : memref<1x1xf32, #tpu.memory_space<vmem>>, vector<1x1xf32>,
    return
  }
}

</mosaic_0001>

<llo_original>
// kernel: tpu_custom_call.1
$region0: #{tpu_custom_call.1}
  #allocation0 [shape = 'u32[]', space=smem, size = 0x4, offset = 0x4, fixed_abs, tag = 'smem constant byte address 0x4 - core index']
  #allocation1 [shape = 'u32[144,128]{1,0:T(1,128)}', space=vmem, size = 0x12000, scoped, tag = 'internal scratch']
  %s0 = inlined_call_operand.hbm [shape: f32[8,128], index: 0, kind: input, shape index: {}]
  %s1 = inlined_call_operand.hbm [shape: f32[8,128], index: 1, kind: input, shape index: {}]
  %s2 = inlined_call_operand.vmem [shape: f32[8,1], index: 2, kind: output, shape index: {0}]
  %s3 = inlined_call_operand.hbm [shape: f32[1,1], index: 3, kind: output, shape index: {1}]
  %4 = xla_tuple %s2, %s3
  %s5 = sld [smem:[#allocation0]]
  $region34: #{tpu_custom_call.1} parent=0
    _
  %s7 = ssub.s32 1, %s5
  %s8 = scalar_select 0, %s7, %s5
  $region1: #{tpu_custom_call.1} parent=0
    #allocation2 [shape = 'u8[4096]{0}', space=vmem, size = 0x1000, scoped, tag = 'input window, operand 0, single buffered']
    #allocation3 [shape = 's32[1]{0}', space=sflag, size = 0x4, scoped, tag = 'scoped memory for tpu_custom_call.1']
    #allocation4 [shape = 's32[1]{0}', space=sflag, size = 0x4, scoped, tag = 'scoped memory for tpu_custom_call.1']
    #allocation5 [shape = 'u8[4096]{0}', space=vmem, size = 0x1000, scoped, tag = 'input window, operand 1, single buffered']
    #allocation6 [shape = 's32[1]{0}', space=sflag, size = 0x4, scoped, tag = 'scoped memory for tpu_custom_call.1']
    #allocation7 [shape = 'u8[512]{0}', space=vmem, size = 0x400, scoped, tag = 'output window, operand 1, single buffered']
    %9 = vsyncpa [#allocation3], 0
    %10 = vsyncpa [#allocation6], 0
    %11 = vsyncpa [#allocation4], 0
    // Predicated region
    $region2: #{tpu_custom_call.1} parent=1 // pred_check
      _
    $region3: #{tpu_custom_call.1} parent=1 // pred_check_branch
      %13 = sbr.rel (0) target = $region5
    $region4: #{tpu_custom_call.1} parent=1 // pred_region
      %s15 = ssub.s32 128, 128
      %16 = vsyncadd [#allocation3], %s15
      %s18 = sshll.u32 [#allocation2], 4
      %s19 = int_to_ptr.vmem [resolvable:$true] %s18
      %21 = dma.hbm_to_vmem [thread:$0]  %s0, 128, %s19, [#allocation3]
    $region5: #{tpu_custom_call.1} parent=1 // pred_fallthru
      _
    // Predicated region
    $region6: #{tpu_custom_call.1} parent=1 // pred_check
      _
    $region7: #{tpu_custom_call.1} parent=1 // pred_check_branch
      %23 = sbr.rel (0) target = $region9
    $region8: #{tpu_custom_call.1} parent=1 // pred_region
      %s25 = ssub.s32 128, 128
      %26 = vsyncadd [#allocation6], %s25
      %s28 = sshll.u32 [#allocation5], 4
      %s29 = int_to_ptr.vmem [resolvable:$true] %s28
      %31 = dma.hbm_to_vmem [thread:$0]  %s1, 128, %s29, [#allocation6]
    $region9: #{tpu_custom_call.1} parent=1 // pred_fallthru
      _
    // Predicated region
    $region10: #{tpu_custom_call.1} parent=1 // pred_check
      _
    $region11: #{tpu_custom_call.1} parent=1 // pred_check_branch
      %33 = sbr.rel (0) target = $region13
    $region12: #{tpu_custom_call.1} parent=1 // pred_region
      %34 = dma.done [#allocation3], 128
    $region13: #{tpu_custom_call.1} parent=1 // pred_fallthru
      _
    // Predicated region
    $region14: #{tpu_custom_call.1} parent=1 // pred_check
      _
    $region15: #{tpu_custom_call.1} parent=1 // pred_check_branch
      %36 = sbr.rel (0) target = $region17
    $region16: #{tpu_custom_call.1} parent=1 // pred_region
      %37 = dma.done [#allocation6], 128
    $region17: #{tpu_custom_call.1} parent=1 // pred_fallthru
      _
    %v38 = vld [vmem:[#allocation2] sm:$0xff]
    %v39 = vmul.f32 %v38, 0.6666667
    %v40 = vld [vmem:[#allocation5] sm:$0xff]
    %v41 = vmul.f32 %v40, 0.5
    %42 = vmax.xlane.f32.xlu0 %v41
    %v43 = vpop.xlane.xlu0 %42
    %v44 = vsub.f32 %v41, %v43
    %v45 = vmul.f32 %v44, 1.442695
    %v46 = vpow.pop %v45
    %47 = vadd.xlane.f32.xlu0 %v46
    %v48 = vpop.xlane.xlu0 %47
    %v49 = vrcp.pop %v48
    %v50 = vmul.f32 %v46, %v49
    %51 = vmax.xlane.f32.xlu0 %v39
    %v52 = vpop.xlane.xlu0 %51
    %v53 = vsub.f32 %v39, %v52
    %v54 = vmul.f32 %v53, 1.442695
    %v55 = vpow.pop %v54
    %56 = vadd.xlane.f32.xlu0 %v55
    %v57 = vpop.xlane.xlu0 %56
    %v58 = vlog2.pop %v57
    %v59 = vmul.f32 %v58, 0.6931472
    %v60 = vsub.f32 %v53, %v59
    %v61 = vmul.f32 %v50, %v60
    %62 = vadd.xlane.f32.xlu0 %v61
    %v63 = vpop.xlane.xlu0 %62
    %v64 = vsub.f32 0.0, %v63
    %vm65 = vcmask 7168
    %66 = vst.msk [vmem:[%s2] sm:$0xff] %vm65, %v64
    %v67 = vrot.slane %v64, 4
    %v68 = vadd.f32 %v64, %v67
    %v69 = vrot.slane %v68, 2
    %v70 = vadd.f32 %v68, %v69
    %v71 = vrot.slane %v70, 1
    %v72 = vadd.f32 %v70, %v71
    %v73 = vmul.f32 %v72, 0.125
    %vm74 = vcmask 0
    %75 = vst.msk [vmem:[#allocation7] sm:$0x1] %vm74, %v73
    // Predicated region
    $region18: #{tpu_custom_call.1} parent=1 // pred_check
      _
    $region19: #{tpu_custom_call.1} parent=1 // pred_check_branch
      %77 = sbr.rel (0) target = $region21
    $region20: #{tpu_custom_call.1} parent=1 // pred_region
      _
    $region21: #{tpu_custom_call.1} parent=1 // pred_fallthru
      _
    // Predicated region
    $region22: #{tpu_custom_call.1} parent=1 // pred_check
      _
    $region23: #{tpu_custom_call.1} parent=1 // pred_check_branch
      %79 = sbr.rel (0) target = $region25
    $region24: #{tpu_custom_call.1} parent=1 // pred_region
      %s81 = ssub.s32 16, 16
      %82 = vsyncadd [#allocation4], %s81
      %s84 = sshll.u32 [#allocation7], 4
      %s85 = int_to_ptr.vmem [resolvable:$true] %s84
      %87 = dma.vmem_to_hbm [thread:$0]  %s85, 16, %s3, [#allocation4]
    $region25: #{tpu_custom_call.1} parent=1 // pred_fallthru
      _
    // Predicated region
    $region26: #{tpu_custom_call.1} parent=1 // pred_check
      _
    $region27: #{tpu_custom_call.1} parent=1 // pred_check_branch
      %89 = sbr.rel (0) target = $region29
    $region28: #{tpu_custom_call.1} parent=1 // pred_region
      _
    $region29: #{tpu_custom_call.1} parent=1 // pred_fallthru
      _
    // Predicated region
    $region30: #{tpu_custom_call.1} parent=1 // pred_check
      _
    $region31: #{tpu_custom_call.1} parent=1 // pred_check_branch
      %91 = sbr.rel (0) target = $region33
    $region32: #{tpu_custom_call.1} parent=1 // pred_region
      %92 = dma.done [#allocation4], 16
    $region33: #{tpu_custom_call.1} parent=1 // pred_fallthru
      _
    %93 = vsyncpa [#allocation3], 1
    %94 = vsyncpa [#allocation6], 1
    %95 = vsyncpa [#allocation4], 1

</llo_original>
